<compile_context>
chip_gen: v5e
topology: v5e:2x2
jax: 0.10.0
libtpu: 0.0.40
codegen_flags: <defaults>
</compile_context>

<pallas_src>
import jax
import jax.numpy as jnp
from jax.experimental import pallas as pl
from jax.experimental.pallas import tpu as pltpu

_LANE = 128   # pad granularity; raise to 256 on v6e/v7x when real D/H >> 128


def _round_up(n, m):
    return ((n + m - 1) // m) * m


# ---------------------------------------------------------------- kernels ---

def _ae_fwd_fused_kernel(x_ref,
                         we1_ref, be1_ref,
                         wmid_ref, bmid_ref,
                         wd2_ref, bd2_ref,
                         out_ref):
    # x arrives in its original dtype; cast to bf16 for the MXU here so the
    # wrapper never pays a separate cast pass over the activations.
    x = x_ref[...].astype(jnp.bfloat16)                       # [tb, D_pad]

    # encoder layer 1: Linear + ReLU (bf16 operands, f32 MXU accumulation)
    h1 = jnp.dot(x, we1_ref[...], preferred_element_type=jnp.float32)
    h1 = jnp.maximum(h1 + be1_ref[...], 0.0).astype(jnp.bfloat16)

    # fused encoder-layer-2 + decoder-layer-1 (no nonlinearity between them):
    #   (h1 @ We2 + be2) @ Wd1 + bd1 == h1 @ Wmid + bmid   (only when H is small)
    h2 = jnp.dot(h1, wmid_ref[...], preferred_element_type=jnp.float32)
    h2 = jnp.maximum(h2 + bmid_ref[...], 0.0).astype(jnp.bfloat16)

    # decoder layer 2: Linear + Sigmoid (tanh form: 1 EUP push + VPU fma)
    logits = jnp.dot(h2, wd2_ref[...], preferred_element_type=jnp.float32)
    logits = logits + bd2_ref[...]
    out_ref[...] = (0.5 * jnp.tanh(0.5 * logits) + 0.5).astype(out_ref.dtype)


def _ae_fwd_unfused_kernel(x_ref,
                           we1_ref, be1_ref,
                           we2_ref, be2_ref,
                           wd1_ref, bd1_ref,
                           wd2_ref, bd2_ref,
                           out_ref):
    x = x_ref[...].astype(jnp.bfloat16)                       # [tb, D_pad]

    h1 = jnp.dot(x, we1_ref[...], preferred_element_type=jnp.float32)
    h1 = jnp.maximum(h1 + be1_ref[...], 0.0).astype(jnp.bfloat16)

    # two thin z_dim-wide matmuls (cheaper than an [H,H] fused weight at big H)
    z = jnp.dot(h1, we2_ref[...], preferred_element_type=jnp.float32)
    z = (z + be2_ref[...]).astype(jnp.bfloat16)

    h2 = jnp.dot(z, wd1_ref[...], preferred_element_type=jnp.float32)
    h2 = jnp.maximum(h2 + bd1_ref[...], 0.0).astype(jnp.bfloat16)

    logits = jnp.dot(h2, wd2_ref[...], preferred_element_type=jnp.float32)
    logits = logits + bd2_ref[...]
    out_ref[...] = (0.5 * jnp.tanh(0.5 * logits) + 0.5).astype(out_ref.dtype)


# ------------------------------------------------------ one-time weight prep ---

def prepare_params(params, *, lane=_LANE):
    """One-time weight preparation: pad to lane-dense shapes, cast MXU operands
    to bf16, keep bias/epilogue in f32, and (conditionally) fuse the two
    z_dim-wide middle matmuls.  Call once; reuse the result for every forward."""
    we1, be1, we2, be2, wd1, bd1, wd2, bd2 = params
    D_in, H = we1.shape
    z_dim = we2.shape[1]

    D_pad = _round_up(D_in, lane)
    H_pad = _round_up(H, lane)
    z_pad = _round_up(z_dim, lane)

    # Fuse only when the [H_pad, H_pad] fused weight is not bigger than the
    # two thin [H_pad, z_pad] + [z_pad, H_pad] weights (i.e. H_pad <= 2*z_pad).
    fuse = H_pad <= 2 * z_pad

    def pad2(a, rows, cols):
        return jnp.pad(a, ((0, rows - a.shape[0]), (0, cols - a.shape[1])))

    we1_p = pad2(we1, D_pad, H_pad).astype(jnp.bfloat16)
    be1_p = pad2(be1, 1, H_pad).astype(jnp.float32)
    wd2_p = pad2(wd2, H_pad, D_pad).astype(jnp.bfloat16)
    bd2_p = pad2(bd2, 1, D_pad).astype(jnp.float32)

    if fuse:
        # algebraically exact fusion (done once, in f32, then cast)
        w_mid = we2 @ wd1                                  # [H, H]
        b_mid = be2 @ wd1 + bd1                            # [1, H]
        weights = (we1_p, be1_p,
                   pad2(w_mid, H_pad, H_pad).astype(jnp.bfloat16),
                   pad2(b_mid, 1, H_pad).astype(jnp.float32),
                   wd2_p, bd2_p)
    else:
        weights = (we1_p, be1_p,
                   pad2(we2, H_pad, z_pad).astype(jnp.bfloat16),
                   pad2(be2, 1, z_pad).astype(jnp.float32),
                   pad2(wd1, z_pad, H_pad).astype(jnp.bfloat16),
                   pad2(bd1, 1, H_pad).astype(jnp.float32),
                   wd2_p, bd2_p)

    weights = tuple(jax.device_put(w) for w in weights)
    return {"fuse": fuse, "D_in": D_in, "D_pad": D_pad,
            "H_pad": H_pad, "z_pad": z_pad, "weights": weights}


# ------------------------------------------------------------------ forward ---

def aewgan_forward(x, prepped, *, tile_b=128, out_dtype=None):
    """Pallas forward for AEwGAN: decoder(encoder(x)).  x: [B, D_in]."""
    B, D_in = x.shape
    assert D_in == prepped["D_in"], "x feature dim does not match prepared params"
    D_pad, H_pad, z_pad = prepped["D_pad"], prepped["H_pad"], prepped["z_pad"]
    fuse = prepped["fuse"]
    weights = prepped["weights"]
    out_dtype = x.dtype if out_dtype is None else jnp.dtype(out_dtype)

    # batch tiling: multiple of 16 (bf16 sublane packing); small enough that a
    # realistic B yields several grid steps per TensorCore.
    tile_b = max(16, (int(tile_b) // 16) * 16)
    B_pad = _round_up(max(B, tile_b), tile_b)
    grid = (B_pad // tile_b,)

    # Pad x only when the shape actually requires it (hot path stays pad-free
    # for aligned shapes); the bf16 cast happens inside the kernel.
    needs_pad = (B_pad != B) or (D_pad != D_in)
    x_in = jnp.pad(x, ((0, B_pad - B), (0, D_pad - D_in))) if needs_pad else x

    bcast = lambda i: (0, 0)       # weights/biases: same block every batch tile
    single = pl.Buffered(1)        # loop-invariant -> single-buffer (halve VMEM)

    def wspec(shape):
        return pl.BlockSpec(shape, bcast, pipeline_mode=single)

    if fuse:
        kernel = _ae_fwd_fused_kernel
        w_specs = [wspec((D_pad, H_pad)), wspec((1, H_pad)),
                   wspec((H_pad, H_pad)), wspec((1, H_pad)),
                   wspec((H_pad, D_pad)), wspec((1, D_pad))]
    else:
        kernel = _ae_fwd_unfused_kernel
        w_specs = [wspec((D_pad, H_pad)), wspec((1, H_pad)),
                   wspec((H_pad, z_pad)), wspec((1, z_pad)),
                   wspec((z_pad, H_pad)), wspec((1, H_pad)),
                   wspec((H_pad, D_pad)), wspec((1, D_pad))]

    # Explicit VMEM budget: 1x (single-buffered) weights + 2x (x tile, out tile)
    # + f32 intermediates, with margin; capped at 64 MiB so it is valid on
    # v5e / v6e (128 MiB) and v7x (64 MiB per TC) alike.
    weight_bytes = sum(int(w.size) * w.dtype.itemsize for w in weights)
    x_tile_bytes = 2 * tile_b * D_pad * x_in.dtype.itemsize
    out_tile_bytes = 2 * tile_b * D_pad * out_dtype.itemsize
    interm_bytes = 4 * tile_b * max(H_pad, D_pad) * 4
    vmem_limit = int(1.4 * (weight_bytes + x_tile_bytes + out_tile_bytes
                            + interm_bytes)) + (4 << 20)
    vmem_limit = min(max(vmem_limit, 16 << 20), 64 << 20)

    out_p = pl.pallas_call(
        kernel,
        out_shape=jax.ShapeDtypeStruct((B_pad, D_pad), out_dtype),
        grid_spec=pltpu.PrefetchScalarGridSpec(
            num_scalar_prefetch=0,
            grid=grid,
            in_specs=[pl.BlockSpec((tile_b, D_pad), lambda i: (i, 0))] + w_specs,
            out_specs=pl.BlockSpec((tile_b, D_pad), lambda i: (i, 0)),
        ),
        compiler_params=pltpu.CompilerParams(
            dimension_semantics=("parallel",),
            vmem_limit_bytes=vmem_limit),
    )(x_in, *weights)

    if needs_pad:
        out_p = out_p[:B, :D_in]
    return out_p


# --------------------------------------------------------------- reference ---

def make_params(key, d_in, hidden, z_dim):
    """Deterministic (PRNGKey-seeded) parameter init, PyTorch-Linear-like scale."""
    ks = jax.random.split(key, 8)

    def lin(kw, kb, fan_in, fan_out):
        bound = 1.0 / jnp.sqrt(fan_in)
        w = jax.random.uniform(kw, (fan_in, fan_out), jnp.float32, -bound, bound)
        b = jax.random.uniform(kb, (1, fan_out), jnp.float32, -bound, bound)
        return w, b

    we1, be1 = lin(ks[0], ks[1], d_in, hidden)
    we2, be2 = lin(ks[2], ks[3], hidden, z_dim)
    wd1, bd1 = lin(ks[4], ks[5], z_dim, hidden)
    wd2, bd2 = lin(ks[6], ks[7], hidden, d_in)
    return (we1, be1, we2, be2, wd1, bd1, wd2, bd2)


def reference_forward(x, params):
    """Pure-JAX f32 reference (mirrors the PyTorch encoder/decoder composition)."""
    we1, be1, we2, be2, wd1, bd1, wd2, bd2 = params
    h1 = jnp.maximum(x @ we1 + be1, 0.0)
    z = h1 @ we2 + be2
    h2 = jnp.maximum(z @ wd1 + bd1, 0.0)
    return jax.nn.sigmoid(h2 @ wd2 + bd2)


if __name__ == "__main__":
    key = jax.random.PRNGKey(0)

    # --- config 1: small H -> fused middle matmul; grid=(4,) so both TCs get
    #     >=2 pipelined steps each.
    B1, D1, H1, Z1 = 512, 64, 32, 16
    k_x1, k_p1, k_x2, k_p2 = jax.random.split(key, 4)
    x1 = jax.random.normal(k_x1, (B1, D1), dtype=jnp.float32)
    p1 = make_params(k_p1, D1, H1, Z1)
    prep1 = prepare_params(p1)
    assert prep1["fuse"]
    out1 = jax.block_until_ready(aewgan_forward(x1, prep1, tile_b=128))
    ref1 = reference_forward(x1, p1)
    assert out1.shape == (B1, D1)
    assert jnp.allclose(out1, ref1, atol=2e-2, rtol=2e-2), "fused path mismatch"

    # --- config 2: larger H (H_pad > 2*z_pad) -> un-fused two-thin-matmul path,
    #     ragged B / D_in exercising the pad-only-when-needed branch.
    B2, D2, H2, Z2 = 200, 48, 320, 16
    x2 = jax.random.normal(k_x2, (B2, D2), dtype=jnp.float32)
    p2 = make_params(k_p2, D2, H2, Z2)
    prep2 = prepare_params(p2)
    assert not prep2["fuse"]
    out2 = jax.block_until_ready(aewgan_forward(x2, prep2, tile_b=128))
    ref2 = reference_forward(x2, p2)
    assert out2.shape == (B2, D2)
    assert jnp.allclose(out2, ref2, atol=2e-2, rtol=2e-2), "unfused path mismatch"

    print("KERNEL_OK")
</pallas_src>

<mosaic_0001>
module attributes {stable_mosaic.version = 11 : i64} {
  func.func @_ae_fwd_fused_kernel(%arg0: i32, %arg1: memref<128x128xf32, #tpu.memory_space<vmem>>, %arg2: memref<128x128xbf16, #tpu.memory_space<vmem>>, %arg3: memref<1x128xf32, #tpu.memory_space<vmem>>, %arg4: memref<128x128xbf16, #tpu.memory_space<vmem>>, %arg5: memref<1x128xf32, #tpu.memory_space<vmem>>, %arg6: memref<128x128xbf16, #tpu.memory_space<vmem>>, %arg7: memref<1x128xf32, #tpu.memory_space<vmem>>, %arg8: memref<128x128xf32, #tpu.memory_space<vmem>>) attributes {dimension_semantics = [#tpu.dimension_semantics<parallel>], iteration_bounds = array<i64: 4>, scalar_prefetch = 0 : i64, scratch_operands = 0 : i64, tpu.core_type = #tpu.core_type<tc>, window_params = [{transform_indices = @transform_0, window_bounds = array<i64: 128, 128>}, {pipeline_mode = #tpu.pipeline_mode<synchronous>, transform_indices = @transform_1, window_bounds = array<i64: 128, 128>}, {pipeline_mode = #tpu.pipeline_mode<synchronous>, transform_indices = @transform_2, window_bounds = array<i64: 1, 128>}, {pipeline_mode = #tpu.pipeline_mode<synchronous>, transform_indices = @transform_3, window_bounds = array<i64: 128, 128>}, {pipeline_mode = #tpu.pipeline_mode<synchronous>, transform_indices = @transform_4, window_bounds = array<i64: 1, 128>}, {pipeline_mode = #tpu.pipeline_mode<synchronous>, transform_indices = @transform_5, window_bounds = array<i64: 128, 128>}, {pipeline_mode = #tpu.pipeline_mode<synchronous>, transform_indices = @transform_6, window_bounds = array<i64: 1, 128>}, {transform_indices = @transform_7, window_bounds = array<i64: 128, 128>}]} {
    %c0 = arith.constant 0 : index
    %c0_0 = arith.constant 0 : index
    %0 = vector.load %arg1[%c0, %c0_0] : memref<128x128xf32, #tpu.memory_space<vmem>>, vector<128x128xf32>
    %1 = arith.truncf %0 : vector<128x128xf32> to vector<128x128xbf16>
    %c0_1 = arith.constant 0 : index
    %c0_2 = arith.constant 0 : index
    %2 = vector.load %arg2[%c0_1, %c0_2] : memref<128x128xbf16, #tpu.memory_space<vmem>>, vector<128x128xbf16>
    %cst = arith.constant dense<0.000000e+00> : vector<128x128xf32>
    %3 = tpu.matmul %1, %2, %cst {dimension_numbers = #tpu.dot_dimension_numbers<[1], [0], [0], [1], [0, 0, 1, 1], [], []>} : vector<128x128xbf16>, vector<128x128xbf16>, vector<128x128xf32> -> vector<128x128xf32>
    %c0_3 = arith.constant 0 : index
    %c0_4 = arith.constant 0 : index
    %4 = vector.load %arg3[%c0_3, %c0_4] : memref<1x128xf32, #tpu.memory_space<vmem>>, vector<1x128xf32>
    %5 = vector.broadcast %4 : vector<1x128xf32> to vector<128x128xf32>
    %6 = arith.addf %3, %5 : vector<128x128xf32>
    %cst_5 = arith.constant 0.000000e+00 : f32
    %7 = vector.broadcast %cst_5 : f32 to vector<128x128xf32>
    %8 = arith.maximumf %6, %7 : vector<128x128xf32>
    %9 = arith.truncf %8 : vector<128x128xf32> to vector<128x128xbf16>
    %c0_6 = arith.constant 0 : index
    %c0_7 = arith.constant 0 : index
    %10 = vector.load %arg4[%c0_6, %c0_7] : memref<128x128xbf16, #tpu.memory_space<vmem>>, vector<128x128xbf16>
    %cst_8 = arith.constant dense<0.000000e+00> : vector<128x128xf32>
    %11 = tpu.matmul %9, %10, %cst_8 {dimension_numbers = #tpu.dot_dimension_numbers<[1], [0], [0], [1], [0, 0, 1, 1], [], []>} : vector<128x128xbf16>, vector<128x128xbf16>, vector<128x128xf32> -> vector<128x128xf32>
    %c0_9 = arith.constant 0 : index
    %c0_10 = arith.constant 0 : index
    %12 = vector.load %arg5[%c0_9, %c0_10] : memref<1x128xf32, #tpu.memory_space<vmem>>, vector<1x128xf32>
    %13 = vector.broadcast %12 : vector<1x128xf32> to vector<128x128xf32>
    %14 = arith.addf %11, %13 : vector<128x128xf32>
    %cst_11 = arith.constant 0.000000e+00 : f32
    %15 = vector.broadcast %cst_11 : f32 to vector<128x128xf32>
    %16 = arith.maximumf %14, %15 : vector<128x128xf32>
    %17 = arith.truncf %16 : vector<128x128xf32> to vector<128x128xbf16>
    %c0_12 = arith.constant 0 : index
    %c0_13 = arith.constant 0 : index
    %18 = vector.load %arg6[%c0_12, %c0_13] : memref<128x128xbf16, #tpu.memory_space<vmem>>, vector<128x128xbf16>
    %cst_14 = arith.constant dense<0.000000e+00> : vector<128x128xf32>
    %19 = tpu.matmul %17, %18, %cst_14 {dimension_numbers = #tpu.dot_dimension_numbers<[1], [0], [0], [1], [0, 0, 1, 1], [], []>} : vector<128x128xbf16>, vector<128x128xbf16>, vector<128x128xf32> -> vector<128x128xf32>
    %c0_15 = arith.constant 0 : index
    %c0_16 = arith.constant 0 : index
    %20 = vector.load %arg7[%c0_15, %c0_16] : memref<1x128xf32, #tpu.memory_space<vmem>>, vector<1x128xf32>
    %21 = vector.broadcast %20 : vector<1x128xf32> to vector<128x128xf32>
    %22 = arith.addf %19, %21 : vector<128x128xf32>
    %cst_17 = arith.constant 5.000000e-01 : f32
    %23 = vector.broadcast %cst_17 : f32 to vector<128x128xf32>
    %24 = arith.mulf %23, %22 : vector<128x128xf32>
    %25 = math.tanh %24 : vector<128x128xf32>
    %cst_18 = arith.constant 5.000000e-01 : f32
    %26 = vector.broadcast %cst_18 : f32 to vector<128x128xf32>
    %27 = arith.mulf %26, %25 : vector<128x128xf32>
    %cst_19 = arith.constant 5.000000e-01 : f32
    %28 = vector.broadcast %cst_19 : f32 to vector<128x128xf32>
    %29 = arith.addf %27, %28 : vector<128x128xf32>
    %c0_20 = arith.constant 0 : index
    %c0_21 = arith.constant 0 : index
    %30 = vector.load %arg8[%c0_20, %c0_21] : memref<128x128xf32, #tpu.memory_space<vmem>>, vector<128x128xf32>
    tpu.vector_store %arg8[%c0_20, %c0_21], %29 {strides = array<i32>} : memref<128x128xf32, #tpu.memory_space<vmem>>, vector<128x128xf32>,
    return
  }
  func.func @transform_0(%arg0: i32) -> (i32, i32) {
    %c0_i32 = arith.constant 0 : i32
    %c0_i32_0 = arith.constant 0 : i32
    return %arg0, %c0_i32 : i32, i32
  }
  func.func @transform_1(%arg0: i32) -> (i32, i32) {
    %c0_i32 = arith.constant 0 : i32
    %c0_i32_0 = arith.constant 0 : i32
    %c0_i32_1 = arith.constant 0 : i32
    return %c0_i32, %c0_i32_0 : i32, i32
  }
  func.func @transform_2(%arg0: i32) -> (i32, i32) {
    %c0_i32 = arith.constant 0 : i32
    %c0_i32_0 = arith.constant 0 : i32
    %c0_i32_1 = arith.constant 0 : i32
    return %c0_i32, %c0_i32_0 : i32, i32
  }
  func.func @transform_3(%arg0: i32) -> (i32, i32) {
    %c0_i32 = arith.constant 0 : i32
    %c0_i32_0 = arith.constant 0 : i32
    %c0_i32_1 = arith.constant 0 : i32
    return %c0_i32, %c0_i32_0 : i32, i32
  }
  func.func @transform_4(%arg0: i32) -> (i32, i32) {
    %c0_i32 = arith.constant 0 : i32
    %c0_i32_0 = arith.constant 0 : i32
    %c0_i32_1 = arith.constant 0 : i32
    return %c0_i32, %c0_i32_0 : i32, i32
  }
  func.func @transform_5(%arg0: i32) -> (i32, i32) {
    %c0_i32 = arith.constant 0 : i32
    %c0_i32_0 = arith.constant 0 : i32
    %c0_i32_1 = arith.constant 0 : i32
    return %c0_i32, %c0_i32_0 : i32, i32
  }
  func.func @transform_6(%arg0: i32) -> (i32, i32) {
    %c0_i32 = arith.constant 0 : i32
    %c0_i32_0 = arith.constant 0 : i32
    %c0_i32_1 = arith.constant 0 : i32
    return %c0_i32, %c0_i32_0 : i32, i32
  }
  func.func @transform_7(%arg0: i32) -> (i32, i32) {
    %c0_i32 = arith.constant 0 : i32
    %c0_i32_0 = arith.constant 0 : i32
    return %arg0, %c0_i32 : i32, i32
  }
}

</mosaic_0001>

<llo_original>
// kernel: tpu_custom_call.1
$region0: #{tpu_custom_call.1}
  #allocation0 [shape = 'u32[]', space=smem, size = 0x4, offset = 0x4, fixed_abs, tag = 'smem constant byte address 0x4 - core index']
  #allocation1 [shape = 'u32[72,128]{1,0:T(1,128)}', space=vmem, size = 0x9000, scoped, tag = 'internal scratch']
  %s0 = inlined_call_operand.hbm [shape: f32[512,128], index: 0, kind: input, shape index: {}]
  %s1 = inlined_call_operand.hbm [shape: bf16[128,128], index: 1, kind: input, shape index: {}]
  %s2 = inlined_call_operand.vmem [shape: f32[1,128], index: 2, kind: input, shape index: {}]
  %s3 = inlined_call_operand.hbm [shape: bf16[128,128], index: 3, kind: input, shape index: {}]
  %s4 = inlined_call_operand.vmem [shape: f32[1,128], index: 4, kind: input, shape index: {}]
  %s5 = inlined_call_operand.hbm [shape: bf16[128,128], index: 5, kind: input, shape index: {}]
  %s6 = inlined_call_operand.vmem [shape: f32[1,128], index: 6, kind: input, shape index: {}]
  %s7 = inlined_call_operand.hbm [shape: f32[512,128], index: 7, kind: output, shape index: {}]
  %s8 = sld [smem:[#allocation0]]
  $region77: #{tpu_custom_call.1} parent=0
    _
  %s10 = ssub.s32 1, %s8
  %s11 = scalar_select 0, %s10, %s8
  $region1: #{tpu_custom_call.1} parent=0
    #allocation2 [shape = 'u8[131072]{0}', space=vmem, size = 0x20000, scoped, tag = 'input window, operand 0']
    #allocation3 [shape = 's32[2]{0}', space=sflag, size = 0x8, scoped, tag = 'scoped memory for tpu_custom_call.1']
    #allocation4 [shape = 's32[2]{0}', space=sflag, size = 0x8, scoped, tag = 'scoped memory for tpu_custom_call.1']
    #allocation5 [shape = 'u8[32768]{0}', space=vmem, size = 0x8000, scoped, tag = 'input window, operand 1, single buffered']
    #allocation6 [shape = 's32[1]{0}', space=sflag, size = 0x4, scoped, tag = 'scoped memory for tpu_custom_call.1']
    #allocation7 [shape = 'u8[32768]{0}', space=vmem, size = 0x8000, scoped, tag = 'input window, operand 3, single buffered']
    #allocation8 [shape = 'u8[32768]{0}', space=vmem, size = 0x8000, scoped, tag = 'input window, operand 5, single buffered']
    #allocation9 [shape = 's32[1]{0}', space=sflag, size = 0x4, scoped, tag = 'scoped memory for tpu_custom_call.1']
    #allocation10 [shape = 'u8[131072]{0}', space=vmem, size = 0x20000, scoped, tag = 'output window, operand 0']
    %12 = vsyncpa [#allocation3], 0
    %s13 = scalar_lea.sflag [#allocation3], 1
    %14 = vsyncpa %s13, 0
    %15 = vsyncpa [#allocation6], 0
    %16 = vsyncpa [#allocation9], 0
    %17 = vsyncpa [#allocation4], 0
    %s18 = scalar_lea.sflag [#allocation4], 1
    %19 = vsyncpa %s18, 0
    loop: start=0, step=1, limit=6
    $region2: #{tpu_custom_call.1} parent=1 // loop_pre_header
      _
    $region3: #{tpu_custom_call.1} parent=1 // loop_header
      %s21 = sphi 0, %s25
      %p22 = scmp.ge.s32.totalorder %s21, 6
      %s31 = sphi 0, %s33
      %s34 = sphi 0, %s31
      %s35 = sphi 0, %s34
      %s51 = sphi 0, %s35
      %s55 = sphi 0, %s55
      %s57 = sphi 0, %s55
      %s58 = sphi 0, %s57
      %s72 = sphi 0, %s58
      %s76 = sphi 0, %s76
      %s78 = sphi 0, %s76
      %s79 = sphi 0, %s78
      %s93 = sphi 0, %s79
      %s97 = sphi 0, %s97
      %s99 = sphi 0, %s97
      %s100 = sphi 0, %s99
      %s114 = sphi 0, %s100
      %s118 = sphi 0, %s118
      %s120 = sphi 0, %s118
      %s121 = sphi 0, %s120
      %s135 = sphi 0, %s121
      %s139 = sphi 0, %s139
      %s141 = sphi 0, %s139
      %s142 = sphi 0, %s141
      %s156 = sphi 0, %s142
      %s160 = sphi 0, %s160
      %s162 = sphi 0, %s160
      %s163 = sphi 0, %s162
      %s177 = sphi 0, %s163
      %s183 = sphi 0, %s185
      %s186 = sphi 0, %s183
      %s187 = sphi 0, %s186
      %s203 = sphi 0, %s187
    $region4: #{tpu_custom_call.1} parent=1 // loop_header_branch
      %24 = sbr.rel (%p22) target = $region8
    $region5: #{tpu_custom_call.1} parent=1 // loop_body
      %s26 = ssub.s32 %s21, 1
      %s27 = ssub.s32 %s21, 2
      %s28 = sadd.s32 %s21, 1
      %s29 = ssub.s32 %s21, %s28
      %p30 = scmp.eq.s32.totalorder %s29, 0
      %s32 = sadd.s32 %s31, 1
      %s33 = scalar_select %p30, %s31, %s32
      %p36 = pneg %p30
      %p37 = scmp.eq.s32.totalorder %s21, 3
      %p38 = por %p36, %p37
      %p39 = scmp.ne.s32.totalorder %s31, %s34
      %p40 = scmp.eq.s32.totalorder %s21, 0
      %p41 = por %p39, %p40
      %p42 = scmp.ne.s32.totalorder %s31, %s34
      %p43 = scmp.eq.s32.totalorder %s26, 3
      %p44 = por %p42, %p43
      %p45 = scmp.ne.s32.totalorder %s34, %s35
      %p46 = scmp.eq.s32.totalorder %s26, 0
      %p47 = por %p45, %p46
      %p48 = scmp.ne.s32.totalorder %s34, %s35
      %p49 = scmp.eq.s32.totalorder %s27, 3
      %p50 = por %p48, %p49
      %p52 = scmp.ne.s32.totalorder %s35, %s51
      %p53 = scmp.eq.s32.totalorder %s27, 0
      %p54 = por %p52, %p53
      %s56 = sadd.s32 %s55, 1
      %p59 = scmp.eq.s32.totalorder %s21, 3
      %p60 = scmp.ne.s32.totalorder %s55, %s57
      %p61 = scmp.eq.s32.totalorder %s21, 0
      %p62 = por %p60, %p61
      %p63 = scmp.ne.s32.totalorder %s55, %s57
      %p64 = scmp.eq.s32.totalorder %s26, 3
      %p65 = por %p63, %p64
      %p66 = scmp.ne.s32.totalorder %s57, %s58
      %p67 = scmp.eq.s32.totalorder %s26, 0
      %p68 = por %p66, %p67
      %p69 = scmp.ne.s32.totalorder %s57, %s58
      %p70 = scmp.eq.s32.totalorder %s27, 3
      %p71 = por %p69, %p70
      %p73 = scmp.ne.s32.totalorder %s58, %s72
      %p74 = scmp.eq.s32.totalorder %s27, 0
      %p75 = por %p73, %p74
      %s77 = sadd.s32 %s76, 1
      %p80 = scmp.eq.s32.totalorder %s21, 3
      %p81 = scmp.ne.s32.totalorder %s76, %s78
      %p82 = scmp.eq.s32.totalorder %s21, 0
      %p83 = por %p81, %p82
      %p84 = scmp.ne.s32.totalorder %s76, %s78
      %p85 = scmp.eq.s32.totalorder %s26, 3
      %p86 = por %p84, %p85
      %p87 = scmp.ne.s32.totalorder %s78, %s79
      %p88 = scmp.eq.s32.totalorder %s26, 0
      %p89 = por %p87, %p88
      %p90 = scmp.ne.s32.totalorder %s78, %s79
      %p91 = scmp.eq.s32.totalorder %s27, 3
      %p92 = por %p90, %p91
      %p94 = scmp.ne.s32.totalorder %s79, %s93
      %p95 = scmp.eq.s32.totalorder %s27, 0
      %p96 = por %p94, %p95
      %s98 = sadd.s32 %s97, 1
      %p101 = scmp.eq.s32.totalorder %s21, 3
      %p102 = scmp.ne.s32.totalorder %s97, %s99
      %p103 = scmp.eq.s32.totalorder %s21, 0
      %p104 = por %p102, %p103
      %p105 = scmp.ne.s32.totalorder %s97, %s99
      %p106 = scmp.eq.s32.totalorder %s26, 3
      %p107 = por %p105, %p106
      %p108 = scmp.ne.s32.totalorder %s99, %s100
      %p109 = scmp.eq.s32.totalorder %s26, 0
      %p110 = por %p108, %p109
      %p111 = scmp.ne.s32.totalorder %s99, %s100
      %p112 = scmp.eq.s32.totalorder %s27, 3
      %p113 = por %p111, %p112
      %p115 = scmp.ne.s32.totalorder %s100, %s114
      %p116 = scmp.eq.s32.totalorder %s27, 0
      %p117 = por %p115, %p116
      %s119 = sadd.s32 %s118, 1
      %p122 = scmp.eq.s32.totalorder %s21, 3
      %p123 = scmp.ne.s32.totalorder %s118, %s120
      %p124 = scmp.eq.s32.totalorder %s21, 0
      %p125 = por %p123, %p124
      %p126 = scmp.ne.s32.totalorder %s118, %s120
      %p127 = scmp.eq.s32.totalorder %s26, 3
      %p128 = por %p126, %p127
      %p129 = scmp.ne.s32.totalorder %s120, %s121
      %p130 = scmp.eq.s32.totalorder %s26, 0
      %p131 = por %p129, %p130
      %p132 = scmp.ne.s32.totalorder %s120, %s121
      %p133 = scmp.eq.s32.totalorder %s27, 3
      %p134 = por %p132, %p133
      %p136 = scmp.ne.s32.totalorder %s121, %s135
      %p137 = scmp.eq.s32.totalorder %s27, 0
      %p138 = por %p136, %p137
      %s140 = sadd.s32 %s139, 1
      %p143 = scmp.eq.s32.totalorder %s21, 3
      %p144 = scmp.ne.s32.totalorder %s139, %s141
      %p145 = scmp.eq.s32.totalorder %s21, 0
      %p146 = por %p144, %p145
      %p147 = scmp.ne.s32.totalorder %s139, %s141
      %p148 = scmp.eq.s32.totalorder %s26, 3
      %p149 = por %p147, %p148
      %p150 = scmp.ne.s32.totalorder %s141, %s142
      %p151 = scmp.eq.s32.totalorder %s26, 0
      %p152 = por %p150, %p151
      %p153 = scmp.ne.s32.totalorder %s141, %s142
      %p154 = scmp.eq.s32.totalorder %s27, 3
      %p155 = por %p153, %p154
      %p157 = scmp.ne.s32.totalorder %s142, %s156
      %p158 = scmp.eq.s32.totalorder %s27, 0
      %p159 = por %p157, %p158
      %s161 = sadd.s32 %s160, 1
      %p164 = scmp.eq.s32.totalorder %s21, 3
      %p165 = scmp.ne.s32.totalorder %s160, %s162
      %p166 = scmp.eq.s32.totalorder %s21, 0
      %p167 = por %p165, %p166
      %p168 = scmp.ne.s32.totalorder %s160, %s162
      %p169 = scmp.eq.s32.totalorder %s26, 3
      %p170 = por %p168, %p169
      %p171 = scmp.ne.s32.totalorder %s162, %s163
      %p172 = scmp.eq.s32.totalorder %s26, 0
      %p173 = por %p171, %p172
      %p174 = scmp.ne.s32.totalorder %s162, %s163
      %p175 = scmp.eq.s32.totalorder %s27, 3
      %p176 = por %p174, %p175
      %p178 = scmp.ne.s32.totalorder %s163, %s177
      %p179 = scmp.eq.s32.totalorder %s27, 0
      %p180 = por %p178, %p179
      %s181 = ssub.s32 %s21, %s28
      %p182 = scmp.eq.s32.totalorder %s181, 0
      %s184 = sadd.s32 %s183, 1
      %s185 = scalar_select %p182, %s183, %s184
      %p188 = pneg %p182
      %p189 = scmp.eq.s32.totalorder %s21, 3
      %p190 = por %p188, %p189
      %p191 = scmp.ne.s32.totalorder %s183, %s186
      %p192 = scmp.eq.s32.totalorder %s21, 0
      %p193 = por %p191, %p192
      %p194 = scmp.ne.s32.totalorder %s183, %s186
      %p195 = scmp.eq.s32.totalorder %s26, 3
      %p196 = por %p194, %p195
      %p197 = scmp.ne.s32.totalorder %s186, %s187
      %p198 = scmp.eq.s32.totalorder %s26, 0
      %p199 = por %p197, %p198
      %p200 = scmp.ne.s32.totalorder %s186, %s187
      %p201 = scmp.eq.s32.totalorder %s27, 3
      %p202 = por %p200, %p201
      %p204 = scmp.ne.s32.totalorder %s187, %s203
      %p205 = scmp.eq.s32.totalorder %s27, 0
      %p206 = por %p204, %p205
      %p207 = scmp.le.s32.totalorder 1, %s21
      %p208 = scmp.lt.s32.totalorder %s21, 5
      %p209 = pnand %p207, %p208
      %p210 = pneg %p209
      // Predicated region
      $region9: #{tpu_custom_call.1} parent=5 // pred_check
        _
      $region10: #{tpu_custom_call.1} parent=5 // pred_check_branch
        %212 = sbr.rel (%p209) target = $region12
      $region11: #{tpu_custom_call.1} parent=5 // pred_region
        %s213 = ssub.s32 %s21, 1
        // Predicated region
        $region13: #{tpu_custom_call.1} parent=11 // pred_check
          %p214 = pneg %p68
        $region14: #{tpu_custom_call.1} parent=11 // pred_check_branch
          %216 = sbr.rel (%p214) target = $region16
        $region15: #{tpu_custom_call.1} parent=11 // pred_region
          %218 = vsyncadd [#allocation6], 0
          %s219 = sshll.u32 %s1, 4
          %s220 = int_to_ptr.hbm [resolvable:$true] %s219
          %s221 = sshll.u32 [#allocation5], 4
          %s222 = int_to_ptr.vmem [resolvable:$true] %s221
          %227 = dma.hbm_to_vmem [thread:$0]  %s220, 1024, %s222, [#allocation6], 64, 64, 4
        $region16: #{tpu_custom_call.1} parent=11 // pred_fallthru
          _
        // Predicated region
        $region17: #{tpu_custom_call.1} parent=11 // pred_check
          %p228 = pneg %p89
        $region18: #{tpu_custom_call.1} parent=11 // pred_check_branch
          %230 = sbr.rel (%p228) target = $region20
        $region19: #{tpu_custom_call.1} parent=11 // pred_region
          _
        $region20: #{tpu_custom_call.1} parent=11 // pred_fallthru
          _
        // Predicated region
        $region21: #{tpu_custom_call.1} parent=11 // pred_check
          %p231 = pneg %p110
        $region22: #{tpu_custom_call.1} parent=11 // pred_check_branch
          %233 = sbr.rel (%p231) target = $region24
        $region23: #{tpu_custom_call.1} parent=11 // pred_region
          %235 = vsyncadd [#allocation6], 0
          %s236 = sshll.u32 %s3, 4
          %s237 = int_to_ptr.hbm [resolvable:$true] %s236
          %s238 = sshll.u32 [#allocation7], 4
          %s239 = int_to_ptr.vmem [resolvable:$true] %s238
          %244 = dma.hbm_to_vmem [thread:$0]  %s237, 1024, %s239, [#allocation6], 64, 64, 4
        $region24: #{tpu_custom_call.1} parent=11 // pred_fallthru
          _
        // Predicated region
        $region25: #{tpu_custom_call.1} parent=11 // pred_check
          %p245 = pneg %p131
        $region26: #{tpu_custom_call.1} parent=11 // pred_check_branch
          %247 = sbr.rel (%p245) target = $region28
        $region27: #{tpu_custom_call.1} parent=11 // pred_region
          _
        $region28: #{tpu_custom_call.1} parent=11 // pred_fallthru
          _
        // Predicated region
        $region29: #{tpu_custom_call.1} parent=11 // pred_check
          %p248 = pneg %p152
        $region30: #{tpu_custom_call.1} parent=11 // pred_check_branch
          %250 = sbr.rel (%p248) target = $region32
        $region31: #{tpu_custom_call.1} parent=11 // pred_region
          %252 = vsyncadd [#allocation9], 0
          %s253 = sshll.u32 %s5, 4
          %s254 = int_to_ptr.hbm [resolvable:$true] %s253
          %s255 = sshll.u32 [#allocation8], 4
          %s256 = int_to_ptr.vmem [resolvable:$true] %s255
          %261 = dma.hbm_to_vmem [thread:$0]  %s254, 1024, %s256, [#allocation9], 64, 64, 4
        $region32: #{tpu_custom_call.1} parent=11 // pred_fallthru
          _
        // Predicated region
        $region33: #{tpu_custom_call.1} parent=11 // pred_check
          %p262 = pneg %p173
        $region34: #{tpu_custom_call.1} parent=11 // pred_check_branch
          %264 = sbr.rel (%p262) target = $region36
        $region35: #{tpu_custom_call.1} parent=11 // pred_region
          _
        $region36: #{tpu_custom_call.1} parent=11 // pred_fallthru
          _
      $region12: #{tpu_custom_call.1} parent=5 // pred_fallthru
        _
      %p265 = scmp.lt.s32.totalorder %s21, 4
      // Predicated region
      $region37: #{tpu_custom_call.1} parent=5 // pred_check
        %p266 = pneg %p265
      $region38: #{tpu_custom_call.1} parent=5 // pred_check_branch
        %268 = sbr.rel (%p266) target = $region40
      $region39: #{tpu_custom_call.1} parent=5 // pred_region
        // Predicated region
        $region41: #{tpu_custom_call.1} parent=39 // pred_check
          %p269 = pneg %p41
        $region42: #{tpu_custom_call.1} parent=39 // pred_check_branch
          %271 = sbr.rel (%p269) target = $region44
        $region43: #{tpu_custom_call.1} parent=39 // pred_region
          %s272 = sand.u32 %s31, 1
          %s273 = scalar_lea.sflag [#allocation3], %s272
          %s274 = sand.u32 %s31, 1
          %s275 = smul.addr %s274, 128
          %s276 = scalar_lea.vmem [#allocation2], %s275
          %s277 = smul.u32 16, %s21
          %279 = vsyncadd %s273, 0
          %s280 = smul.addr %s277, 8
          %s281 = scalar_lea.hbm %s0, %s280
          %s282 = sshll.u32 %s281, 4
          %s283 = int_to_ptr.hbm [resolvable:$true] %s282
          %s284 = sshll.u32 %s276, 4
          %s285 = int_to_ptr.vmem [resolvable:$true] %s284
          %290 = dma.hbm_to_vmem [thread:$0]  %s283, 2048, %s285, %s273, 128, 128, 8
        $region44: #{tpu_custom_call.1} parent=39 // pred_fallthru
          _
      $region40: #{tpu_custom_call.1} parent=5 // pred_fallthru
        _
      %p291 = scmp.le.s32.totalorder 1, %s21
      %p292 = scmp.lt.s32.totalorder %s21, 5
      %p293 = pnand %p291, %p292
      %p294 = pneg %p293
      // Predicated region
      $region45: #{tpu_custom_call.1} parent=5 // pred_check
        _
      $region46: #{tpu_custom_call.1} parent=5 // pred_check_branch
        %296 = sbr.rel (%p293) target = $region48
      $region47: #{tpu_custom_call.1} parent=5 // pred_region
        %s297 = ssub.s32 %s21, 1
        %s298 = sand.u32 %s34, 1
        %s299 = scalar_lea.sflag [#allocation3], %s298
        %s300 = sand.u32 %s34, 1
        %s301 = smul.addr %s300, 128
        %s302 = scalar_lea.vmem [#allocation2], %s301
        // Predicated region
        $region49: #{tpu_custom_call.1} parent=47 // pred_check
          %p303 = pneg %p47
        $region50: #{tpu_custom_call.1} parent=47 // pred_check_branch
          %305 = sbr.rel (%p303) target = $region52
        $region51: #{tpu_custom_call.1} parent=47 // pred_region
          %307 = dma.done %s299, 2048
        $region52: #{tpu_custom_call.1} parent=47 // pred_fallthru
          _
        // Predicated region
        $region53: #{tpu_custom_call.1} parent=47 // pred_check
          %p308 = pneg %p68
        $region54: #{tpu_custom_call.1} parent=47 // pred_check_branch
          %310 = sbr.rel (%p308) target = $region56
        $region55: #{tpu_custom_call.1} parent=47 // pred_region
          %312 = dma.done [#allocation6], 1024
        $region56: #{tpu_custom_call.1} parent=47 // pred_fallthru
          _
        // Predicated region
        $region57: #{tpu_custom_call.1} parent=47 // pred_check
          %p313 = pneg %p110
        $region58: #{tpu_custom_call.1} parent=47 // pred_check_branch
          %315 = sbr.rel (%p313) target = $region60
        $region59: #{tpu_custom_call.1} parent=47 // pred_region
          %317 = dma.done [#allocation6], 1024
        $region60: #{tpu_custom_call.1} parent=47 // pred_fallthru
          _
        // Predicated region
        $region61: #{tpu_custom_call.1} parent=47 // pred_check
          %p318 = pneg %p152
        $region62: #{tpu_custom_call.1} parent=47 // pred_check_branch
          %320 = sbr.rel (%p318) target = $region64
        $region63: #{tpu_custom_call.1} parent=47 // pred_region
          %322 = dma.done [#allocation9], 1024
        $region64: #{tpu_custom_call.1} parent=47 // pred_fallthru
          _
        %s323 = sand.u32 %s34, 1
        %s324 = scalar_lea.sflag [#allocation3], %s323
        %s325 = sand.u32 %s34, 1
        %s326 = smul.addr %s325, 128
        %s327 = scalar_lea.vmem [#allocation2], %s326
        %p328 = pneg %p47
        %p329 = pneg %p44
        %p330 = pneg %p68
        %p331 = pneg %p65
        %p332 = pneg %p89
        %p333 = pneg %p86
        %p334 = pneg %p110
        %p335 = pneg %p107
        %p336 = pneg %p131
        %p337 = pneg %p128
        %p338 = pneg %p152
        %p339 = pneg %p149
        %p340 = pneg %p173
        %p341 = pneg %p170
        %p342 = pneg %p199
        %p343 = pneg %p196
        %s344 = sand.u32 %s186, 1
        %s345 = scalar_lea.sflag [#allocation4], %s344
        %s346 = sand.u32 %s186, 1
        %s347 = smul.addr %s346, 128
        %s348 = scalar_lea.vmem [#allocation10], %s347
        %s349 = smul.u32 16, %s26
        %s350 = smul.u32 16, %s26
        %v351 = vld [vmem:[%s302] sm:$0xff]
        %v352 = vld [vmem:[%s302 + $0x8] sm:$0xff]
        %v353 = vld [vmem:[%s302 + $0x10] sm:$0xff]
        %v354 = vld [vmem:[%s302 + $0x18] sm:$0xff]
        %v355 = vld [vmem:[%s302 + $0x20] sm:$0xff]
        %v356 = vld [vmem:[%s302 + $0x28] sm:$0xff]
        %v357 = vld [vmem:[%s302 + $0x30] sm:$0xff]
        %v358 = vld [vmem:[%s302 + $0x38] sm:$0xff]
        %v359 = vld [vmem:[%s302 + $0x40] sm:$0xff]
        %v360 = vld [vmem:[%s302 + $0x48] sm:$0xff]
        %v361 = vld [vmem:[%s302 + $0x50] sm:$0xff]
        %v362 = vld [vmem:[%s302 + $0x58] sm:$0xff]
        %v363 = vld [vmem:[%s302 + $0x60] sm:$0xff]
        %v364 = vld [vmem:[%s302 + $0x68] sm:$0xff]
        %v365 = vld [vmem:[%s302 + $0x70] sm:$0xff]
        %v366 = vld [vmem:[%s302 + $0x78] sm:$0xff]
        %v367 = vpack.c.bf16 %v352, %v351
        %v368 = vpack.c.bf16 %v354, %v353
        %v369 = vpack.c.bf16 %v356, %v355
        %v370 = vpack.c.bf16 %v358, %v357
        %v371 = vpack.c.bf16 %v360, %v359
        %v372 = vpack.c.bf16 %v362, %v361
        %v373 = vpack.c.bf16 %v364, %v363
        %v374 = vpack.c.bf16 %v366, %v365
        %v375 = vld [vmem:[#allocation5] sm:$0xf]
        %v376 = vld [vmem:[#allocation5 + $0x4] sm:$0xf]
        %v377 = vld [vmem:[#allocation5 + $0x8] sm:$0xf]
        %v378 = vld [vmem:[#allocation5 + $0xc] sm:$0xf]
        %v379 = vld [vmem:[#allocation5 + $0x10] sm:$0xf]
        %v380 = vld [vmem:[#allocation5 + $0x14] sm:$0xf]
        %v381 = vld [vmem:[#allocation5 + $0x18] sm:$0xf]
        %v382 = vld [vmem:[#allocation5 + $0x1c] sm:$0xf]
        %v383 = vld [vmem:[#allocation5 + $0x20] sm:$0xf]
        %v384 = vld [vmem:[#allocation5 + $0x24] sm:$0xf]
        %v385 = vld [vmem:[#allocation5 + $0x28] sm:$0xf]
        %v386 = vld [vmem:[#allocation5 + $0x2c] sm:$0xf]
        %v387 = vld [vmem:[#allocation5 + $0x30] sm:$0xf]
        %v388 = vld [vmem:[#allocation5 + $0x34] sm:$0xf]
        %v389 = vld [vmem:[#allocation5 + $0x38] sm:$0xf]
        %v390 = vld [vmem:[#allocation5 + $0x3c] sm:$0xf]
        %v391 = vld [vmem:[%s2] sm:$0x1]
        %v393 = vperm.slane %v391, 0
        %v411 = vunpack.c.l.b16 %v375
        %v412 = vunpack.c.l.b16 %v376
        %v413 = vunpack.c.l.b16 %v377
        %v414 = vunpack.c.l.b16 %v378
        %v415 = vunpack.c.l.b16 %v379
        %v416 = vunpack.c.l.b16 %v380
        %v417 = vunpack.c.l.b16 %v381
        %v418 = vunpack.c.l.b16 %v382
        %v419 = vunpack.c.l.b16 %v383
        %v420 = vunpack.c.l.b16 %v384
        %v421 = vunpack.c.l.b16 %v385
        %v422 = vunpack.c.l.b16 %v386
        %v423 = vunpack.c.l.b16 %v387
        %v424 = vunpack.c.l.b16 %v388
        %v425 = vunpack.c.l.b16 %v389
        %v426 = vunpack.c.l.b16 %v390
        %v427 = vpack.c.b16 %v412, %v411
        %v428 = vpack.c.b16 %v414, %v413
        %v429 = vpack.c.b16 %v416, %v415
        %v430 = vpack.c.b16 %v418, %v417
        %v431 = vpack.c.b16 %v420, %v419
        %v432 = vpack.c.b16 %v422, %v421
        %v433 = vpack.c.b16 %v424, %v423
        %v434 = vpack.c.b16 %v426, %v425
        %443 = vmatpush.bf16.msra.mxu0 %v434
        %444 = vmatpush.bf16.msra.mxu0 %v433
        %445 = vmatpush.bf16.msra.mxu0 %v432
        %446 = vmatpush.bf16.msra.mxu0 %v431
        %447 = vmatpush.bf16.msra.mxu0 %v430
        %448 = vmatpush.bf16.msra.mxu0 %v429
        %449 = vmatpush.bf16.msra.mxu0 %v428
        %450 = vmatpush.bf16.msra.mxu0 %v427
        %451 = vmatmul.bf16.gmra.mxu0 %v367
        %v452 = vpop.f32.mrf.mxu0
        %v453 = vadd.f32 %v393, %v452
        %v454 = vpop.f32.mrf.mxu0
        %v455 = vadd.f32 %v393, %v454
        %456 = vmatmul.bf16.gmra.mxu0 %v368
        %v457 = vpop.f32.mrf.mxu0
        %v458 = vadd.f32 %v393, %v457
        %v459 = vpop.f32.mrf.mxu0
        %v460 = vadd.f32 %v393, %v459
        %461 = vmatmul.bf16.gmra.mxu0 %v369
        %v462 = vpop.f32.mrf.mxu0
        %v463 = vadd.f32 %v393, %v462
        %v464 = vpop.f32.mrf.mxu0
        %v465 = vadd.f32 %v393, %v464
        %466 = vmatmul.bf16.gmra.mxu0 %v370
        %v467 = vpop.f32.mrf.mxu0
        %v468 = vadd.f32 %v393, %v467
        %v469 = vpop.f32.mrf.mxu0
        %v470 = vadd.f32 %v393, %v469
        %471 = vmatmul.bf16.gmra.mxu0 %v371
        %v472 = vpop.f32.mrf.mxu0
        %v473 = vadd.f32 %v393, %v472
        %v474 = vpop.f32.mrf.mxu0
        %v475 = vadd.f32 %v393, %v474
        %476 = vmatmul.bf16.gmra.mxu0 %v372
        %v477 = vpop.f32.mrf.mxu0
        %v478 = vadd.f32 %v393, %v477
        %v479 = vpop.f32.mrf.mxu0
        %v480 = vadd.f32 %v393, %v479
        %481 = vmatmul.bf16.gmra.mxu0 %v373
        %v482 = vpop.f32.mrf.mxu0
        %v483 = vadd.f32 %v393, %v482
        %v484 = vpop.f32.mrf.mxu0
        %v485 = vadd.f32 %v393, %v484
        %486 = vmatmul.bf16.gmra.mxu0 %v374
        %v487 = vpop.f32.mrf.mxu0
        %v488 = vadd.f32 %v393, %v487
        %v489 = vpop.f32.mrf.mxu0
        %v490 = vadd.f32 %v393, %v489
        %491 = vdwg.mxu0
        %v492 = vmax.f32 %v453, 0.0
        %v493 = vmax.f32 %v455, 0.0
        %v494 = vmax.f32 %v458, 0.0
        %v495 = vmax.f32 %v460, 0.0
        %v496 = vmax.f32 %v463, 0.0
        %v497 = vmax.f32 %v465, 0.0
        %v498 = vmax.f32 %v468, 0.0
        %v499 = vmax.f32 %v470, 0.0
        %v500 = vmax.f32 %v473, 0.0
        %v501 = vmax.f32 %v475, 0.0
        %v502 = vmax.f32 %v478, 0.0
        %v503 = vmax.f32 %v480, 0.0
        %v504 = vmax.f32 %v483, 0.0
        %v505 = vmax.f32 %v485, 0.0
        %v506 = vmax.f32 %v488, 0.0
        %v507 = vmax.f32 %v490, 0.0
        %v508 = vpack.c.bf16 %v493, %v492
        %v509 = vpack.c.bf16 %v495, %v494
        %v510 = vpack.c.bf16 %v497, %v496
        %v511 = vpack.c.bf16 %v499, %v498
        %v512 = vpack.c.bf16 %v501, %v500
        %v513 = vpack.c.bf16 %v503, %v502
        %v514 = vpack.c.bf16 %v505, %v504
        %v515 = vpack.c.bf16 %v507, %v506
        %v516 = vld [vmem:[#allocation7] sm:$0xf]
        %v517 = vld [vmem:[#allocation7 + $0x4] sm:$0xf]
        %v518 = vld [vmem:[#allocation7 + $0x8] sm:$0xf]
        %v519 = vld [vmem:[#allocation7 + $0xc] sm:$0xf]
        %v520 = vld [vmem:[#allocation7 + $0x10] sm:$0xf]
        %v521 = vld [vmem:[#allocation7 + $0x14] sm:$0xf]
        %v522 = vld [vmem:[#allocation7 + $0x18] sm:$0xf]
        %v523 = vld [vmem:[#allocation7 + $0x1c] sm:$0xf]
        %v524 = vld [vmem:[#allocation7 + $0x20] sm:$0xf]
        %v525 = vld [vmem:[#allocation7 + $0x24] sm:$0xf]
        %v526 = vld [vmem:[#allocation7 + $0x28] sm:$0xf]
        %v527 = vld [vmem:[#allocation7 + $0x2c] sm:$0xf]
        %v528 = vld [vmem:[#allocation7 + $0x30] sm:$0xf]
        %v529 = vld [vmem:[#allocation7 + $0x34] sm:$0xf]
        %v530 = vld [vmem:[#allocation7 + $0x38] sm:$0xf]
        %v531 = vld [vmem:[#allocation7 + $0x3c] sm:$0xf]
        %v532 = vld [vmem:[%s4] sm:$0x1]
        %v534 = vperm.slane %v532, 0
        %v552 = vunpack.c.l.b16 %v516
        %v553 = vunpack.c.l.b16 %v517
        %v554 = vunpack.c.l.b16 %v518
        %v555 = vunpack.c.l.b16 %v519
        %v556 = vunpack.c.l.b16 %v520
        %v557 = vunpack.c.l.b16 %v521
        %v558 = vunpack.c.l.b16 %v522
        %v559 = vunpack.c.l.b16 %v523
        %v560 = vunpack.c.l.b16 %v524
        %v561 = vunpack.c.l.b16 %v525
        %v562 = vunpack.c.l.b16 %v526
        %v563 = vunpack.c.l.b16 %v527
        %v564 = vunpack.c.l.b16 %v528
        %v565 = vunpack.c.l.b16 %v529
        %v566 = vunpack.c.l.b16 %v530
        %v567 = vunpack.c.l.b16 %v531
        %v568 = vpack.c.b16 %v553, %v552
        %v569 = vpack.c.b16 %v555, %v554
        %v570 = vpack.c.b16 %v557, %v556
        %v571 = vpack.c.b16 %v559, %v558
        %v572 = vpack.c.b16 %v561, %v560
        %v573 = vpack.c.b16 %v563, %v562
        %v574 = vpack.c.b16 %v565, %v564
        %v575 = vpack.c.b16 %v567, %v566
        %584 = vmatpush.bf16.msra.mxu0 %v575
        %585 = vmatpush.bf16.msra.mxu0 %v574
        %586 = vmatpush.bf16.msra.mxu0 %v573
        %587 = vmatpush.bf16.msra.mxu0 %v572
        %588 = vmatpush.bf16.msra.mxu0 %v571
        %589 = vmatpush.bf16.msra.mxu0 %v570
        %590 = vmatpush.bf16.msra.mxu0 %v569
        %591 = vmatpush.bf16.msra.mxu0 %v568
        %592 = vmatmul.bf16.gmra.mxu0 %v508
        %v593 = vpop.f32.mrf.mxu0
        %v594 = vadd.f32 %v534, %v593
        %v595 = vpop.f32.mrf.mxu0
        %v596 = vadd.f32 %v534, %v595
        %597 = vmatmul.bf16.gmra.mxu0 %v509
        %v598 = vpop.f32.mrf.mxu0
        %v599 = vadd.f32 %v534, %v598
        %v600 = vpop.f32.mrf.mxu0
        %v601 = vadd.f32 %v534, %v600
        %602 = vmatmul.bf16.gmra.mxu0 %v510
        %v603 = vpop.f32.mrf.mxu0
        %v604 = vadd.f32 %v534, %v603
        %v605 = vpop.f32.mrf.mxu0
        %v606 = vadd.f32 %v534, %v605
        %607 = vmatmul.bf16.gmra.mxu0 %v511
        %v608 = vpop.f32.mrf.mxu0
        %v609 = vadd.f32 %v534, %v608
        %v610 = vpop.f32.mrf.mxu0
        %v611 = vadd.f32 %v534, %v610
        %612 = vmatmul.bf16.gmra.mxu0 %v512
        %v613 = vpop.f32.mrf.mxu0
        %v614 = vadd.f32 %v534, %v613
        %v615 = vpop.f32.mrf.mxu0
        %v616 = vadd.f32 %v534, %v615
        %617 = vmatmul.bf16.gmra.mxu0 %v513
        %v618 = vpop.f32.mrf.mxu0
        %v619 = vadd.f32 %v534, %v618
        %v620 = vpop.f32.mrf.mxu0
        %v621 = vadd.f32 %v534, %v620
        %622 = vmatmul.bf16.gmra.mxu0 %v514
        %v623 = vpop.f32.mrf.mxu0
        %v624 = vadd.f32 %v534, %v623
        %v625 = vpop.f32.mrf.mxu0
        %v626 = vadd.f32 %v534, %v625
        %627 = vmatmul.bf16.gmra.mxu0 %v515
        %v628 = vpop.f32.mrf.mxu0
        %v629 = vadd.f32 %v534, %v628
        %v630 = vpop.f32.mrf.mxu0
        %v631 = vadd.f32 %v534, %v630
        %632 = vdwg.mxu0
        %v633 = vmax.f32 %v594, 0.0
        %v634 = vmax.f32 %v596, 0.0
        %v635 = vmax.f32 %v599, 0.0
        %v636 = vmax.f32 %v601, 0.0
        %v637 = vmax.f32 %v604, 0.0
        %v638 = vmax.f32 %v606, 0.0
        %v639 = vmax.f32 %v609, 0.0
        %v640 = vmax.f32 %v611, 0.0
        %v641 = vmax.f32 %v614, 0.0
        %v642 = vmax.f32 %v616, 0.0
        %v643 = vmax.f32 %v619, 0.0
        %v644 = vmax.f32 %v621, 0.0
        %v645 = vmax.f32 %v624, 0.0
        %v646 = vmax.f32 %v626, 0.0
        %v647 = vmax.f32 %v629, 0.0
        %v648 = vmax.f32 %v631, 0.0
        %v649 = vpack.c.bf16 %v634, %v633
        %v650 = vpack.c.bf16 %v636, %v635
        %v651 = vpack.c.bf16 %v638, %v637
        %v652 = vpack.c.bf16 %v640, %v639
        %v653 = vpack.c.bf16 %v642, %v641
        %v654 = vpack.c.bf16 %v644, %v643
        %v655 = vpack.c.bf16 %v646, %v645
        %v656 = vpack.c.bf16 %v648, %v647
        %v657 = vld [vmem:[#allocation8] sm:$0xf]
        %v658 = vld [vmem:[#allocation8 + $0x4] sm:$0xf]
        %v659 = vld [vmem:[#allocation8 + $0x8] sm:$0xf]
        %v660 = vld [vmem:[#allocation8 + $0xc] sm:$0xf]
        %v661 = vld [vmem:[#allocation8 + $0x10] sm:$0xf]
        %v662 = vld [vmem:[#allocation8 + $0x14] sm:$0xf]
        %v663 = vld [vmem:[#allocation8 + $0x18] sm:$0xf]
        %v664 = vld [vmem:[#allocation8 + $0x1c] sm:$0xf]
        %v665 = vld [vmem:[#allocation8 + $0x20] sm:$0xf]
        %v666 = vld [vmem:[#allocation8 + $0x24] sm:$0xf]
        %v667 = vld [vmem:[#allocation8 + $0x28] sm:$0xf]
        %v668 = vld [vmem:[#allocation8 + $0x2c] sm:$0xf]
        %v669 = vld [vmem:[#allocation8 + $0x30] sm:$0xf]
        %v670 = vld [vmem:[#allocation8 + $0x34] sm:$0xf]
        %v671 = vld [vmem:[#allocation8 + $0x38] sm:$0xf]
        %v672 = vld [vmem:[#allocation8 + $0x3c] sm:$0xf]
        %v673 = vld [vmem:[%s6] sm:$0x1]
        %v675 = vperm.slane %v673, 0
        %v693 = vunpack.c.l.b16 %v657
        %v694 = vunpack.c.l.b16 %v658
        %v695 = vunpack.c.l.b16 %v659
        %v696 = vunpack.c.l.b16 %v660
        %v697 = vunpack.c.l.b16 %v661
        %v698 = vunpack.c.l.b16 %v662
        %v699 = vunpack.c.l.b16 %v663
        %v700 = vunpack.c.l.b16 %v664
        %v701 = vunpack.c.l.b16 %v665
        %v702 = vunpack.c.l.b16 %v666
        %v703 = vunpack.c.l.b16 %v667
        %v704 = vunpack.c.l.b16 %v668
        %v705 = vunpack.c.l.b16 %v669
        %v706 = vunpack.c.l.b16 %v670
        %v707 = vunpack.c.l.b16 %v671
        %v708 = vunpack.c.l.b16 %v672
        %v709 = vpack.c.b16 %v694, %v693
        %v710 = vpack.c.b16 %v696, %v695
        %v711 = vpack.c.b16 %v698, %v697
        %v712 = vpack.c.b16 %v700, %v699
        %v713 = vpack.c.b16 %v702, %v701
        %v714 = vpack.c.b16 %v704, %v703
        %v715 = vpack.c.b16 %v706, %v705
        %v716 = vpack.c.b16 %v708, %v707
        %725 = vmatpush.bf16.msra.mxu0 %v716
        %726 = vmatpush.bf16.msra.mxu0 %v715
        %727 = vmatpush.bf16.msra.mxu0 %v714
        %728 = vmatpush.bf16.msra.mxu0 %v713
        %729 = vmatpush.bf16.msra.mxu0 %v712
        %730 = vmatpush.bf16.msra.mxu0 %v711
        %731 = vmatpush.bf16.msra.mxu0 %v710
        %732 = vmatpush.bf16.msra.mxu0 %v709
        %733 = vmatmul.bf16.gmra.mxu0 %v649
        %v734 = vpop.f32.mrf.mxu0
        %v735 = vadd.f32 %v675, %v734
        %v736 = vpop.f32.mrf.mxu0
        %v737 = vadd.f32 %v675, %v736
        %738 = vmatmul.bf16.gmra.mxu0 %v650
        %v739 = vpop.f32.mrf.mxu0
        %v740 = vadd.f32 %v675, %v739
        %v741 = vpop.f32.mrf.mxu0
        %v742 = vadd.f32 %v675, %v741
        %743 = vmatmul.bf16.gmra.mxu0 %v651
        %v744 = vpop.f32.mrf.mxu0
        %v745 = vadd.f32 %v675, %v744
        %v746 = vpop.f32.mrf.mxu0
        %v747 = vadd.f32 %v675, %v746
        %748 = vmatmul.bf16.gmra.mxu0 %v652
        %v749 = vpop.f32.mrf.mxu0
        %v750 = vadd.f32 %v675, %v749
        %v751 = vpop.f32.mrf.mxu0
        %v752 = vadd.f32 %v675, %v751
        %753 = vmatmul.bf16.gmra.mxu0 %v653
        %v754 = vpop.f32.mrf.mxu0
        %v755 = vadd.f32 %v675, %v754
        %v756 = vpop.f32.mrf.mxu0
        %v757 = vadd.f32 %v675, %v756
        %758 = vmatmul.bf16.gmra.mxu0 %v654
        %v759 = vpop.f32.mrf.mxu0
        %v760 = vadd.f32 %v675, %v759
        %v761 = vpop.f32.mrf.mxu0
        %v762 = vadd.f32 %v675, %v761
        %763 = vmatmul.bf16.gmra.mxu0 %v655
        %v764 = vpop.f32.mrf.mxu0
        %v765 = vadd.f32 %v675, %v764
        %v766 = vpop.f32.mrf.mxu0
        %v767 = vadd.f32 %v675, %v766
        %768 = vmatmul.bf16.gmra.mxu0 %v656
        %v769 = vpop.f32.mrf.mxu0
        %v770 = vadd.f32 %v675, %v769
        %v771 = vpop.f32.mrf.mxu0
        %v772 = vadd.f32 %v675, %v771
        %773 = vdwg.mxu0
        %v774 = vmul.f32 %v735, 0.5
        %v775 = vmul.f32 %v737, 0.5
        %v776 = vmul.f32 %v740, 0.5
        %v777 = vmul.f32 %v742, 0.5
        %v778 = vmul.f32 %v745, 0.5
        %v779 = vmul.f32 %v747, 0.5
        %v780 = vmul.f32 %v750, 0.5
        %v781 = vmul.f32 %v752, 0.5
        %v782 = vmul.f32 %v755, 0.5
        %v783 = vmul.f32 %v757, 0.5
        %v784 = vmul.f32 %v760, 0.5
        %v785 = vmul.f32 %v762, 0.5
        %v786 = vmul.f32 %v765, 0.5
        %v787 = vmul.f32 %v767, 0.5
        %v788 = vmul.f32 %v770, 0.5
        %v789 = vmul.f32 %v772, 0.5
        %v790 = vtanh.pop %v774
        %v791 = vtanh.pop %v775
        %v792 = vtanh.pop %v776
        %v793 = vtanh.pop %v777
        %v794 = vtanh.pop %v778
        %v795 = vtanh.pop %v779
        %v796 = vtanh.pop %v780
        %v797 = vtanh.pop %v781
        %v798 = vtanh.pop %v782
        %v799 = vtanh.pop %v783
        %v800 = vtanh.pop %v784
        %v801 = vtanh.pop %v785
        %v802 = vtanh.pop %v786
        %v803 = vtanh.pop %v787
        %v804 = vtanh.pop %v788
        %v805 = vtanh.pop %v789
        %v806 = vmul.f32 %v790, 0.5
        %v807 = vmul.f32 %v791, 0.5
        %v808 = vmul.f32 %v792, 0.5
        %v809 = vmul.f32 %v793, 0.5
        %v810 = vmul.f32 %v794, 0.5
        %v811 = vmul.f32 %v795, 0.5
        %v812 = vmul.f32 %v796, 0.5
        %v813 = vmul.f32 %v797, 0.5
        %v814 = vmul.f32 %v798, 0.5
        %v815 = vmul.f32 %v799, 0.5
        %v816 = vmul.f32 %v800, 0.5
        %v817 = vmul.f32 %v801, 0.5
        %v818 = vmul.f32 %v802, 0.5
        %v819 = vmul.f32 %v803, 0.5
        %v820 = vmul.f32 %v804, 0.5
        %v821 = vmul.f32 %v805, 0.5
        %v822 = vadd.f32 %v806, 0.5
        %v823 = vadd.f32 %v807, 0.5
        %v824 = vadd.f32 %v808, 0.5
        %v825 = vadd.f32 %v809, 0.5
        %v826 = vadd.f32 %v810, 0.5
        %v827 = vadd.f32 %v811, 0.5
        %v828 = vadd.f32 %v812, 0.5
        %v829 = vadd.f32 %v813, 0.5
        %v830 = vadd.f32 %v814, 0.5
        %v831 = vadd.f32 %v815, 0.5
        %v832 = vadd.f32 %v816, 0.5
        %v833 = vadd.f32 %v817, 0.5
        %v834 = vadd.f32 %v818, 0.5
        %v835 = vadd.f32 %v819, 0.5
        %v836 = vadd.f32 %v820, 0.5
        %v837 = vadd.f32 %v821, 0.5
        %838 = vst [vmem:[%s348] sm:$0xff] %v822
        %839 = vst [vmem:[%s348 + $0x8] sm:$0xff] %v823
        %840 = vst [vmem:[%s348 + $0x10] sm:$0xff] %v824
        %841 = vst [vmem:[%s348 + $0x18] sm:$0xff] %v825
        %842 = vst [vmem:[%s348 + $0x20] sm:$0xff] %v826
        %843 = vst [vmem:[%s348 + $0x28] sm:$0xff] %v827
        %844 = vst [vmem:[%s348 + $0x30] sm:$0xff] %v828
        %845 = vst [vmem:[%s348 + $0x38] sm:$0xff] %v829
        %846 = vst [vmem:[%s348 + $0x40] sm:$0xff] %v830
        %847 = vst [vmem:[%s348 + $0x48] sm:$0xff] %v831
        %848 = vst [vmem:[%s348 + $0x50] sm:$0xff] %v832
        %849 = vst [vmem:[%s348 + $0x58] sm:$0xff] %v833
        %850 = vst [vmem:[%s348 + $0x60] sm:$0xff] %v834
        %851 = vst [vmem:[%s348 + $0x68] sm:$0xff] %v835
        %852 = vst [vmem:[%s348 + $0x70] sm:$0xff] %v836
        %853 = vst [vmem:[%s348 + $0x78] sm:$0xff] %v837
        %s854 = sand.u32 %s186, 1
        %s855 = scalar_lea.sflag [#allocation4], %s854
        %s856 = sand.u32 %s186, 1
        %s857 = smul.addr %s856, 128
        %s858 = scalar_lea.vmem [#allocation10], %s857
        // Predicated region
        $region65: #{tpu_custom_call.1} parent=47 // pred_check
          %p859 = pneg %p196
        $region66: #{tpu_custom_call.1} parent=47 // pred_check_branch
          %861 = sbr.rel (%p859) target = $region68
        $region67: #{tpu_custom_call.1} parent=47 // pred_region
          %s862 = smul.u32 16, %s26
          %864 = vsyncadd %s855, 0
          %s865 = smul.addr %s862, 8
          %s866 = scalar_lea.hbm %s7, %s865
          %s867 = sshll.u32 %s858, 4
          %s868 = int_to_ptr.vmem [resolvable:$true] %s867
          %s869 = sshll.u32 %s866, 4
          %s870 = int_to_ptr.hbm [resolvable:$true] %s869
          %875 = dma.vmem_to_hbm [thread:$0]  %s868, 2048, %s870, %s855, 128, 128, 8
        $region68: #{tpu_custom_call.1} parent=47 // pred_fallthru
          _
      $region48: #{tpu_custom_call.1} parent=5 // pred_fallthru
        _
      %p876 = scmp.le.s32.totalorder 2, %s21
      // Predicated region
      $region69: #{tpu_custom_call.1} parent=5 // pred_check
        %p877 = pneg %p876
      $region70: #{tpu_custom_call.1} parent=5 // pred_check_branch
        %879 = sbr.rel (%p877) target = $region72
      $region71: #{tpu_custom_call.1} parent=5 // pred_region
        %s880 = ssub.s32 %s21, 2
        // Predicated region
        $region73: #{tpu_custom_call.1} parent=71 // pred_check
          %p881 = pneg %p202
        $region74: #{tpu_custom_call.1} parent=71 // pred_check_branch
          %883 = sbr.rel (%p881) target = $region76
        $region75: #{tpu_custom_call.1} parent=71 // pred_region
          %s884 = sand.u32 %s187, 1
          %s885 = scalar_lea.sflag [#allocation4], %s884
          %s886 = sand.u32 %s187, 1
          %s887 = smul.addr %s886, 128
          %s888 = scalar_lea.vmem [#allocation10], %s887
          %890 = dma.done %s885, 2048
        $region76: #{tpu_custom_call.1} parent=71 // pred_fallthru
          _
      $region72: #{tpu_custom_call.1} parent=5 // pred_fallthru
        _
    $region6: #{tpu_custom_call.1} parent=1 // loop_footer
      %s25 = sadd.s32 1, %s21
    $region7: #{tpu_custom_call.1} parent=1 // loop_footer_branch
      %20 = sbr.rel target = $region3
    $region8: #{tpu_custom_call.1} parent=1 // loop_exit
      _
    %891 = vsyncpa [#allocation3], 1
    %s892 = scalar_lea.sflag [#allocation3], 1
    %893 = vsyncpa %s892, 1
    %894 = vsyncpa [#allocation6], 1
    %895 = vsyncpa [#allocation9], 1
    %896 = vsyncpa [#allocation4], 1
    %s897 = scalar_lea.sflag [#allocation4], 1
    %898 = vsyncpa %s897, 1

</llo_original>
